<compile_context>
chip_gen: v7x
topology: tpu7x:2x2x1
jax: 0.10.0
libtpu: 0.0.40
codegen_flags: <defaults>
</compile_context>

<pallas_src>
import jax
import jax.numpy as jnp
from jax import lax
from jax.experimental import pallas as pl
from jax.experimental.pallas import tpu as pltpu


def rnn_kernel(x_ref, wih_ref, whh_ref, brnn_ref, wfc_ref, bfc_ref,
               out_ref, hbuf):
    """Sequential tanh-RNN + Linear, restructured around the serial dependency.

    x_ref:    (seq, input)      f32
    wih_ref:  (input, hidden)   f32   (transposed weight_ih_l0)
    whh_ref:  (hidden, hidden)  f32   (transposed weight_hh_l0)
    brnn_ref: (1, hidden)       f32   (b_ih + b_hh)
    wfc_ref:  (hidden, output)  f32   (transposed fc.weight)
    bfc_ref:  (1, output)       f32
    out_ref:  (seq, output)     f32
    hbuf:     (seq, hidden)     f32   holds x@W_ih+b, overwritten with h_t
    """
    seq = x_ref.shape[0]
    hidden = whh_ref.shape[0]

    # (1) Batched input projection for ALL timesteps (no recurrent dep):
    #     one MXU call instead of seq tiny ones; bias folded in here.
    hbuf[...] = (
        jnp.dot(x_ref[...], wih_ref[...], preferred_element_type=jnp.float32)
        + brnn_ref[...])

    # Hoist recurrent weight load out of the loop (compiler does not reliably
    # CSE ref loads inside the stateful loop body).
    whh = whh_ref[...]

    # (2) Serial recurrence. h is the loop carry (stays in vregs); per step
    #     only the dependent (1,H)@(H,H) matmul + tanh remain on the critical
    #     path. h_t overwrites hbuf[t] in place for the batched fc below.
    def step(t, h):
        pre = hbuf[pl.ds(t, 1), :] + jnp.dot(
            h, whh, preferred_element_type=jnp.float32)
        h_new = jnp.tanh(pre)
        hbuf[pl.ds(t, 1), :] = h_new
        return h_new

    h0 = jnp.zeros((1, hidden), jnp.float32)
    lax.fori_loop(0, seq, step, h0, unroll=True)

    # (3) Batched output projection + single (lane-batched) store.
    out_ref[...] = (
        jnp.dot(hbuf[...], wfc_ref[...], preferred_element_type=jnp.float32)
        + bfc_ref[...])


def prepare_params(w_ih, w_hh, b_ih, b_hh, w_fc, b_fc):
    """One-time weight preprocessing (transpose + RNN bias fold).

    PyTorch layout in:  w_ih (H,I), w_hh (H,H), b_* (H,), w_fc (O,H), b_fc (O,)
    Kernel layout out:  (I,H), (H,H), (1,H), (H,O), (1,O)
    """
    hidden_size = w_hh.shape[0]
    output_size = w_fc.shape[0]
    wih_t = jnp.asarray(w_ih, jnp.float32).T
    whh_t = jnp.asarray(w_hh, jnp.float32).T
    brnn = (jnp.asarray(b_ih, jnp.float32)
            + jnp.asarray(b_hh, jnp.float32)).reshape(1, hidden_size)
    wfc_t = jnp.asarray(w_fc, jnp.float32).T
    bfc = jnp.asarray(b_fc, jnp.float32).reshape(1, output_size)
    return wih_t, whh_t, brnn, wfc_t, bfc


@jax.jit
def rnn_forward_prepared(x, wih_t, whh_t, brnn, wfc_t, bfc):
    """x: (seq_len, input_size). Weights already in kernel layout.
    Returns flat (seq_len * output_size,) like the PyTorch module."""
    x = jnp.asarray(x, jnp.float32)
    seq_len, input_size = x.shape
    hidden_size = whh_t.shape[0]
    output_size = wfc_t.shape[1]

    vmem = pl.BlockSpec(memory_space=pltpu.MemorySpace.VMEM)

    flops = 2 * seq_len * (input_size * hidden_size
                           + hidden_size * hidden_size
                           + hidden_size * output_size)
    bytes_accessed = 4 * (x.size + wih_t.size + whh_t.size + brnn.size
                          + wfc_t.size + bfc.size + seq_len * output_size)

    # TODO(synk): if hidden_size/seq_len scale up, re-budget the whole-array
    # VMEM residency against v7x's 64 MiB and tile the recurrent matmul over K.
    out = pl.pallas_call(
        rnn_kernel,
        out_shape=jax.ShapeDtypeStruct((seq_len, output_size), jnp.float32),
        in_specs=[vmem] * 6,
        out_specs=vmem,
        scratch_shapes=[pltpu.VMEM((seq_len, hidden_size), jnp.float32)],
        compiler_params=pltpu.CompilerParams(
            vmem_limit_bytes=32 * 1024 * 1024),
        cost_estimate=pl.CostEstimate(
            flops=flops,
            transcendentals=seq_len * hidden_size,
            bytes_accessed=bytes_accessed),
    )(x, wih_t, whh_t, brnn, wfc_t, bfc)

    return out.reshape(-1)


def rnn_forward(x, w_ih, w_hh, b_ih, b_hh, w_fc, b_fc):
    params = prepare_params(w_ih, w_hh, b_ih, b_hh, w_fc, b_fc)
    return rnn_forward_prepared(x, *params)


def rnn_reference(x, w_ih, w_hh, b_ih, b_hh, w_fc, b_fc):
    """Pure-JAX reference mirroring torch.nn.RNN(batch_first=True) + Linear."""
    hidden_size = w_hh.shape[0]

    def step(h, x_t):
        h_new = jnp.tanh(x_t @ w_ih.T + b_ih + h @ w_hh.T + b_hh)
        return h_new, h_new

    h0 = jnp.zeros((hidden_size,), jnp.float32)
    _, hs = lax.scan(step, h0, x)           # (seq, hidden)
    y = hs @ w_fc.T + b_fc                  # (seq, output)
    return y.reshape(-1)


if __name__ == "__main__":
    input_size, hidden_size, output_size = 8, 32, 4
    seq_len = 8

    key = jax.random.PRNGKey(0)
    ks = jax.random.split(key, 8)
    bound_rnn = 1.0 / jnp.sqrt(hidden_size)
    bound_fc = 1.0 / jnp.sqrt(hidden_size)

    x = jax.random.normal(ks[0], (seq_len, input_size), jnp.float32)
    w_ih = jax.random.uniform(ks[1], (hidden_size, input_size), jnp.float32,
                              -bound_rnn, bound_rnn)
    w_hh = jax.random.uniform(ks[2], (hidden_size, hidden_size), jnp.float32,
                              -bound_rnn, bound_rnn)
    b_ih = jax.random.uniform(ks[3], (hidden_size,), jnp.float32,
                              -bound_rnn, bound_rnn)
    b_hh = jax.random.uniform(ks[4], (hidden_size,), jnp.float32,
                              -bound_rnn, bound_rnn)
    w_fc = jax.random.uniform(ks[5], (output_size, hidden_size), jnp.float32,
                              -bound_fc, bound_fc)
    b_fc = jax.random.uniform(ks[6], (output_size,), jnp.float32,
                              -bound_fc, bound_fc)

    y = rnn_forward(x, w_ih, w_hh, b_ih, b_hh, w_fc, b_fc)
    jax.block_until_ready(y)

    y_ref = rnn_reference(x, w_ih, w_hh, b_ih, b_hh, w_fc, b_fc)
    assert y.shape == (seq_len * output_size,)
    assert jnp.allclose(y, y_ref, rtol=1e-4, atol=1e-4), "mismatch vs reference"

    print("KERNEL_OK")
</pallas_src>

<mosaic_0001>
module attributes {stable_mosaic.version = 11 : i64} {
  func.func @rnn_kernel(%arg0: memref<8x8xf32, #tpu.memory_space<vmem>>, %arg1: memref<8x32xf32, #tpu.memory_space<vmem>>, %arg2: memref<32x32xf32, #tpu.memory_space<vmem>>, %arg3: memref<1x32xf32, #tpu.memory_space<vmem>>, %arg4: memref<32x4xf32, #tpu.memory_space<vmem>>, %arg5: memref<1x4xf32, #tpu.memory_space<vmem>>, %arg6: memref<8x4xf32, #tpu.memory_space<vmem>>, %arg7: memref<8x32xf32, #tpu.memory_space<vmem>>) attributes {dimension_semantics = [], scalar_prefetch = 0 : i64, scratch_operands = 1 : i64, tpu.core_type = #tpu.core_type<tc>} {
    %c0 = arith.constant 0 : index
    %c0_0 = arith.constant 0 : index
    %0 = vector.load %arg0[%c0, %c0_0] : memref<8x8xf32, #tpu.memory_space<vmem>>, vector<8x8xf32>
    %c0_1 = arith.constant 0 : index
    %c0_2 = arith.constant 0 : index
    %1 = vector.load %arg1[%c0_1, %c0_2] : memref<8x32xf32, #tpu.memory_space<vmem>>, vector<8x32xf32>
    %cst = arith.constant dense<0.000000e+00> : vector<8x32xf32>
    %2 = tpu.matmul %0, %1, %cst {dimension_numbers = #tpu.dot_dimension_numbers<[1], [0], [0], [1], [0, 0, 1, 1], [], []>} : vector<8x8xf32>, vector<8x32xf32>, vector<8x32xf32> -> vector<8x32xf32>
    %c0_3 = arith.constant 0 : index
    %c0_4 = arith.constant 0 : index
    %3 = vector.load %arg3[%c0_3, %c0_4] : memref<1x32xf32, #tpu.memory_space<vmem>>, vector<1x32xf32>
    %4 = vector.broadcast %3 : vector<1x32xf32> to vector<8x32xf32>
    %5 = arith.addf %2, %4 : vector<8x32xf32>
    %c0_5 = arith.constant 0 : index
    %c0_6 = arith.constant 0 : index
    %6 = vector.load %arg7[%c0_5, %c0_6] : memref<8x32xf32, #tpu.memory_space<vmem>>, vector<8x32xf32>
    tpu.vector_store %arg7[%c0_5, %c0_6], %5 {strides = array<i32>} : memref<8x32xf32, #tpu.memory_space<vmem>>, vector<8x32xf32>,
    %c0_7 = arith.constant 0 : index
    %c0_8 = arith.constant 0 : index
    %7 = vector.load %arg2[%c0_7, %c0_8] : memref<32x32xf32, #tpu.memory_space<vmem>>, vector<32x32xf32>
    %cst_9 = arith.constant 0.000000e+00 : f32
    %8 = vector.broadcast %cst_9 : f32 to vector<1x32xf32>
    %c0_i32 = arith.constant 0 : i32
    %9 = arith.index_cast %c0_i32 : i32 to index
    %c0_10 = arith.constant 0 : index
    %10 = vector.load %arg7[%9, %c0_10] : memref<8x32xf32, #tpu.memory_space<vmem>>, vector<1x32xf32>
    %cst_11 = arith.constant dense<0.000000e+00> : vector<1x32xf32>
    %11 = tpu.matmul %8, %7, %cst_11 {dimension_numbers = #tpu.dot_dimension_numbers<[1], [0], [0], [1], [0, 0, 1, 1], [], []>} : vector<1x32xf32>, vector<32x32xf32>, vector<1x32xf32> -> vector<1x32xf32>
    %12 = arith.addf %10, %11 : vector<1x32xf32>
    %13 = math.tanh %12 : vector<1x32xf32>
    %14 = arith.index_cast %c0_i32 : i32 to index
    %c0_12 = arith.constant 0 : index
    %15 = vector.load %arg7[%14, %c0_12] : memref<8x32xf32, #tpu.memory_space<vmem>>, vector<1x32xf32>
    tpu.vector_store %arg7[%14, %c0_12], %13 {strides = array<i32>} : memref<8x32xf32, #tpu.memory_space<vmem>>, vector<1x32xf32>,
    %c1_i32 = arith.constant 1 : i32
    %16 = arith.index_cast %c1_i32 : i32 to index
    %c0_13 = arith.constant 0 : index
    %17 = vector.load %arg7[%16, %c0_13] : memref<8x32xf32, #tpu.memory_space<vmem>>, vector<1x32xf32>
    %cst_14 = arith.constant dense<0.000000e+00> : vector<1x32xf32>
    %18 = tpu.matmul %13, %7, %cst_14 {dimension_numbers = #tpu.dot_dimension_numbers<[1], [0], [0], [1], [0, 0, 1, 1], [], []>} : vector<1x32xf32>, vector<32x32xf32>, vector<1x32xf32> -> vector<1x32xf32>
    %19 = arith.addf %17, %18 : vector<1x32xf32>
    %20 = math.tanh %19 : vector<1x32xf32>
    %21 = arith.index_cast %c1_i32 : i32 to index
    %c0_15 = arith.constant 0 : index
    %22 = vector.load %arg7[%21, %c0_15] : memref<8x32xf32, #tpu.memory_space<vmem>>, vector<1x32xf32>
    tpu.vector_store %arg7[%21, %c0_15], %20 {strides = array<i32>} : memref<8x32xf32, #tpu.memory_space<vmem>>, vector<1x32xf32>,
    %c2_i32 = arith.constant 2 : i32
    %23 = arith.index_cast %c2_i32 : i32 to index
    %c0_16 = arith.constant 0 : index
    %24 = vector.load %arg7[%23, %c0_16] : memref<8x32xf32, #tpu.memory_space<vmem>>, vector<1x32xf32>
    %cst_17 = arith.constant dense<0.000000e+00> : vector<1x32xf32>
    %25 = tpu.matmul %20, %7, %cst_17 {dimension_numbers = #tpu.dot_dimension_numbers<[1], [0], [0], [1], [0, 0, 1, 1], [], []>} : vector<1x32xf32>, vector<32x32xf32>, vector<1x32xf32> -> vector<1x32xf32>
    %26 = arith.addf %24, %25 : vector<1x32xf32>
    %27 = math.tanh %26 : vector<1x32xf32>
    %28 = arith.index_cast %c2_i32 : i32 to index
    %c0_18 = arith.constant 0 : index
    %29 = vector.load %arg7[%28, %c0_18] : memref<8x32xf32, #tpu.memory_space<vmem>>, vector<1x32xf32>
    tpu.vector_store %arg7[%28, %c0_18], %27 {strides = array<i32>} : memref<8x32xf32, #tpu.memory_space<vmem>>, vector<1x32xf32>,
    %c3_i32 = arith.constant 3 : i32
    %30 = arith.index_cast %c3_i32 : i32 to index
    %c0_19 = arith.constant 0 : index
    %31 = vector.load %arg7[%30, %c0_19] : memref<8x32xf32, #tpu.memory_space<vmem>>, vector<1x32xf32>
    %cst_20 = arith.constant dense<0.000000e+00> : vector<1x32xf32>
    %32 = tpu.matmul %27, %7, %cst_20 {dimension_numbers = #tpu.dot_dimension_numbers<[1], [0], [0], [1], [0, 0, 1, 1], [], []>} : vector<1x32xf32>, vector<32x32xf32>, vector<1x32xf32> -> vector<1x32xf32>
    %33 = arith.addf %31, %32 : vector<1x32xf32>
    %34 = math.tanh %33 : vector<1x32xf32>
    %35 = arith.index_cast %c3_i32 : i32 to index
    %c0_21 = arith.constant 0 : index
    %36 = vector.load %arg7[%35, %c0_21] : memref<8x32xf32, #tpu.memory_space<vmem>>, vector<1x32xf32>
    tpu.vector_store %arg7[%35, %c0_21], %34 {strides = array<i32>} : memref<8x32xf32, #tpu.memory_space<vmem>>, vector<1x32xf32>,
    %c4_i32 = arith.constant 4 : i32
    %37 = arith.index_cast %c4_i32 : i32 to index
    %c0_22 = arith.constant 0 : index
    %38 = vector.load %arg7[%37, %c0_22] : memref<8x32xf32, #tpu.memory_space<vmem>>, vector<1x32xf32>
    %cst_23 = arith.constant dense<0.000000e+00> : vector<1x32xf32>
    %39 = tpu.matmul %34, %7, %cst_23 {dimension_numbers = #tpu.dot_dimension_numbers<[1], [0], [0], [1], [0, 0, 1, 1], [], []>} : vector<1x32xf32>, vector<32x32xf32>, vector<1x32xf32> -> vector<1x32xf32>
    %40 = arith.addf %38, %39 : vector<1x32xf32>
    %41 = math.tanh %40 : vector<1x32xf32>
    %42 = arith.index_cast %c4_i32 : i32 to index
    %c0_24 = arith.constant 0 : index
    %43 = vector.load %arg7[%42, %c0_24] : memref<8x32xf32, #tpu.memory_space<vmem>>, vector<1x32xf32>
    tpu.vector_store %arg7[%42, %c0_24], %41 {strides = array<i32>} : memref<8x32xf32, #tpu.memory_space<vmem>>, vector<1x32xf32>,
    %c5_i32 = arith.constant 5 : i32
    %44 = arith.index_cast %c5_i32 : i32 to index
    %c0_25 = arith.constant 0 : index
    %45 = vector.load %arg7[%44, %c0_25] : memref<8x32xf32, #tpu.memory_space<vmem>>, vector<1x32xf32>
    %cst_26 = arith.constant dense<0.000000e+00> : vector<1x32xf32>
    %46 = tpu.matmul %41, %7, %cst_26 {dimension_numbers = #tpu.dot_dimension_numbers<[1], [0], [0], [1], [0, 0, 1, 1], [], []>} : vector<1x32xf32>, vector<32x32xf32>, vector<1x32xf32> -> vector<1x32xf32>
    %47 = arith.addf %45, %46 : vector<1x32xf32>
    %48 = math.tanh %47 : vector<1x32xf32>
    %49 = arith.index_cast %c5_i32 : i32 to index
    %c0_27 = arith.constant 0 : index
    %50 = vector.load %arg7[%49, %c0_27] : memref<8x32xf32, #tpu.memory_space<vmem>>, vector<1x32xf32>
    tpu.vector_store %arg7[%49, %c0_27], %48 {strides = array<i32>} : memref<8x32xf32, #tpu.memory_space<vmem>>, vector<1x32xf32>,
    %c6_i32 = arith.constant 6 : i32
    %51 = arith.index_cast %c6_i32 : i32 to index
    %c0_28 = arith.constant 0 : index
    %52 = vector.load %arg7[%51, %c0_28] : memref<8x32xf32, #tpu.memory_space<vmem>>, vector<1x32xf32>
    %cst_29 = arith.constant dense<0.000000e+00> : vector<1x32xf32>
    %53 = tpu.matmul %48, %7, %cst_29 {dimension_numbers = #tpu.dot_dimension_numbers<[1], [0], [0], [1], [0, 0, 1, 1], [], []>} : vector<1x32xf32>, vector<32x32xf32>, vector<1x32xf32> -> vector<1x32xf32>
    %54 = arith.addf %52, %53 : vector<1x32xf32>
    %55 = math.tanh %54 : vector<1x32xf32>
    %56 = arith.index_cast %c6_i32 : i32 to index
    %c0_30 = arith.constant 0 : index
    %57 = vector.load %arg7[%56, %c0_30] : memref<8x32xf32, #tpu.memory_space<vmem>>, vector<1x32xf32>
    tpu.vector_store %arg7[%56, %c0_30], %55 {strides = array<i32>} : memref<8x32xf32, #tpu.memory_space<vmem>>, vector<1x32xf32>,
    %c7_i32 = arith.constant 7 : i32
    %58 = arith.index_cast %c7_i32 : i32 to index
    %c0_31 = arith.constant 0 : index
    %59 = vector.load %arg7[%58, %c0_31] : memref<8x32xf32, #tpu.memory_space<vmem>>, vector<1x32xf32>
    %cst_32 = arith.constant dense<0.000000e+00> : vector<1x32xf32>
    %60 = tpu.matmul %55, %7, %cst_32 {dimension_numbers = #tpu.dot_dimension_numbers<[1], [0], [0], [1], [0, 0, 1, 1], [], []>} : vector<1x32xf32>, vector<32x32xf32>, vector<1x32xf32> -> vector<1x32xf32>
    %61 = arith.addf %59, %60 : vector<1x32xf32>
    %62 = math.tanh %61 : vector<1x32xf32>
    %63 = arith.index_cast %c7_i32 : i32 to index
    %c0_33 = arith.constant 0 : index
    %64 = vector.load %arg7[%63, %c0_33] : memref<8x32xf32, #tpu.memory_space<vmem>>, vector<1x32xf32>
    tpu.vector_store %arg7[%63, %c0_33], %62 {strides = array<i32>} : memref<8x32xf32, #tpu.memory_space<vmem>>, vector<1x32xf32>,
    %c8_i32 = arith.constant 8 : i32
    %c0_34 = arith.constant 0 : index
    %c0_35 = arith.constant 0 : index
    %65 = vector.load %arg7[%c0_34, %c0_35] : memref<8x32xf32, #tpu.memory_space<vmem>>, vector<8x32xf32>
    %c0_36 = arith.constant 0 : index
    %c0_37 = arith.constant 0 : index
    %66 = vector.load %arg4[%c0_36, %c0_37] : memref<32x4xf32, #tpu.memory_space<vmem>>, vector<32x4xf32>
    %cst_38 = arith.constant dense<0.000000e+00> : vector<8x4xf32>
    %67 = tpu.matmul %65, %66, %cst_38 {dimension_numbers = #tpu.dot_dimension_numbers<[1], [0], [0], [1], [0, 0, 1, 1], [], []>} : vector<8x32xf32>, vector<32x4xf32>, vector<8x4xf32> -> vector<8x4xf32>
    %c0_39 = arith.constant 0 : index
    %c0_40 = arith.constant 0 : index
    %68 = vector.load %arg5[%c0_39, %c0_40] : memref<1x4xf32, #tpu.memory_space<vmem>>, vector<1x4xf32>
    %69 = vector.broadcast %68 : vector<1x4xf32> to vector<8x4xf32>
    %70 = arith.addf %67, %69 : vector<8x4xf32>
    %c0_41 = arith.constant 0 : index
    %c0_42 = arith.constant 0 : index
    %71 = vector.load %arg6[%c0_41, %c0_42] : memref<8x4xf32, #tpu.memory_space<vmem>>, vector<8x4xf32>
    tpu.vector_store %arg6[%c0_41, %c0_42], %70 {strides = array<i32>} : memref<8x4xf32, #tpu.memory_space<vmem>>, vector<8x4xf32>,
    return
  }
}

</mosaic_0001>

<llo_original>
// kernel: rnn_forward_prepared.1
$region0: #{rnn_forward_prepared.1}
  #allocation0 [shape = 'u32[]', space=smem, size = 0x4, offset = 0x4, fixed_abs, tag = 'smem constant byte address 0x4 - core index']
  #allocation1 [shape = 'u32[144,128]{1,0:T(1,128)}', space=vmem, size = 0x12000, scoped, tag = 'internal scratch']
  #allocation2 [shape = 'f32[8,32]{1,0:T(8,128)}', space=vmem, size = 0x1000, scoped, tag = 'scratch operand']
  %s0 = inlined_call_operand.vmem [shape: f32[8,8], index: 0, kind: input, shape index: {}]
  %s1 = inlined_call_operand.hbm [shape: f32[8,32], index: 1, kind: input, shape index: {}]
  %s2 = inlined_call_operand.vmem [shape: f32[32,32], index: 2, kind: input, shape index: {}]
  %s3 = inlined_call_operand.vmem [shape: f32[1,32], index: 3, kind: input, shape index: {}]
  %s4 = inlined_call_operand.vmem [shape: f32[32,4], index: 4, kind: input, shape index: {}]
  %s5 = inlined_call_operand.vmem [shape: f32[1,4], index: 5, kind: input, shape index: {}]
  %s6 = inlined_call_operand.vmem [shape: f32[8,4], index: 6, kind: output, shape index: {}]
  %s7 = sld [smem:[#allocation0]]
  $region38: #{rnn_forward_prepared.1} parent=0
    _
  %s9 = ssub.s32 1, %s7
  %s10 = scalar_select 0, %s9, %s7
  $region1: #{rnn_forward_prepared.1} parent=0
    #allocation3 [shape = 'u8[4096]{0}', space=vmem, size = 0x1000, scoped, tag = 'input window, operand 1, single buffered']
    #allocation4 [shape = 's32[1]{0}', space=sflag, size = 0x4, scoped, tag = 'scoped memory for rnn_forward_prepared.1']
    %11 = vsyncpa [#allocation4], 0
    // Predicated region
    $region2: #{rnn_forward_prepared.1} parent=1 // pred_check
      _
    $region3: #{rnn_forward_prepared.1} parent=1 // pred_check_branch
      %13 = sbr.rel (0) target = $region5
    $region4: #{rnn_forward_prepared.1} parent=1 // pred_region
      _
    $region5: #{rnn_forward_prepared.1} parent=1 // pred_fallthru
      _
    // Predicated region
    $region6: #{rnn_forward_prepared.1} parent=1 // pred_check
      _
    $region7: #{rnn_forward_prepared.1} parent=1 // pred_check_branch
      %15 = sbr.rel (0) target = $region9
    $region8: #{rnn_forward_prepared.1} parent=1 // pred_region
      %s17 = ssub.s32 128, 128
      %18 = vsyncadd [#allocation4], %s17
      %s20 = sshll.u32 [#allocation3], 4
      %s21 = int_to_ptr.vmem [resolvable:$true] %s20
      %23 = dma.hbm_to_vmem [thread:$0]  %s1, 128, %s21, [#allocation4]
    $region9: #{rnn_forward_prepared.1} parent=1 // pred_fallthru
      _
    // Predicated region
    $region10: #{rnn_forward_prepared.1} parent=1 // pred_check
      _
    $region11: #{rnn_forward_prepared.1} parent=1 // pred_check_branch
      %25 = sbr.rel (0) target = $region13
    $region12: #{rnn_forward_prepared.1} parent=1 // pred_region
      _
    $region13: #{rnn_forward_prepared.1} parent=1 // pred_fallthru
      _
    // Predicated region
    $region14: #{rnn_forward_prepared.1} parent=1 // pred_check
      _
    $region15: #{rnn_forward_prepared.1} parent=1 // pred_check_branch
      %27 = sbr.rel (0) target = $region17
    $region16: #{rnn_forward_prepared.1} parent=1 // pred_region
      _
    $region17: #{rnn_forward_prepared.1} parent=1 // pred_fallthru
      _
    // Predicated region
    $region18: #{rnn_forward_prepared.1} parent=1 // pred_check
      _
    $region19: #{rnn_forward_prepared.1} parent=1 // pred_check_branch
      %29 = sbr.rel (0) target = $region21
    $region20: #{rnn_forward_prepared.1} parent=1 // pred_region
      _
    $region21: #{rnn_forward_prepared.1} parent=1 // pred_fallthru
      _
    // Predicated region
    $region22: #{rnn_forward_prepared.1} parent=1 // pred_check
      _
    $region23: #{rnn_forward_prepared.1} parent=1 // pred_check_branch
      %31 = sbr.rel (0) target = $region25
    $region24: #{rnn_forward_prepared.1} parent=1 // pred_region
      _
    $region25: #{rnn_forward_prepared.1} parent=1 // pred_fallthru
      _
    // Predicated region
    $region26: #{rnn_forward_prepared.1} parent=1 // pred_check
      _
    $region27: #{rnn_forward_prepared.1} parent=1 // pred_check_branch
      %33 = sbr.rel (0) target = $region29
    $region28: #{rnn_forward_prepared.1} parent=1 // pred_region
      %34 = dma.done [#allocation4], 128
    $region29: #{rnn_forward_prepared.1} parent=1 // pred_fallthru
      _
    %v35 = vld [vmem:[%s0] sm:$0xff]
    %v36 = vld [vmem:[#allocation3] sm:$0xff]
    %v37 = vld [vmem:[%s3] sm:$0x1]
    %v39 = vlaneseq
    %v40 = vshrl.u32 %v39, 7
    %v41 = vsub.s32 0, %v40
    %v42 = vrot.slane %v37, %v41
    %vm44 = vcmask 64512
    %v46 = vsel %vm44, %v35, 0
    %48 = vmatprep.subr.mxu0 0.0
    %49 = vmatpush1.msra.mxu0 %v36
    %50 = vmatprep.subr.mxu0 0.0
    %51 = vmatpush1.msra.mxu0 0.0
    %52 = vmatprep.subr.mxu0 0.0
    %53 = vmatpush1.msra.mxu0 0.0
    %54 = vmatprep.subr.mxu0 0.0
    %55 = vmatpush1.msra.mxu0 0.0
    %56 = vmatprep.subr.mxu0 0.0
    %57 = vmatpush1.msra.mxu0 0.0
    %58 = vmatprep.subr.mxu0 0.0
    %59 = vmatpush1.msra.mxu0 0.0
    %60 = vmatprep.subr.mxu0 0.0
    %61 = vmatpush1.msra.mxu0 0.0
    %62 = vmatprep.subr.mxu0 0.0
    %63 = vmatpush1.msra.mxu0 0.0
    %64 = vmatprep.subr.mxu0 0.0
    %65 = vmatpush1.msra.mxu0 0.0
    %66 = vmatprep.subr.mxu0 0.0
    %67 = vmatpush1.msra.mxu0 0.0
    %68 = vmatprep.subr.mxu0 0.0
    %69 = vmatpush1.msra.mxu0 0.0
    %70 = vmatprep.subr.mxu0 0.0
    %71 = vmatpush1.msra.mxu0 0.0
    %72 = vmatprep.subr.mxu0 0.0
    %73 = vmatpush1.msra.mxu0 0.0
    %74 = vmatprep.subr.mxu0 0.0
    %75 = vmatpush1.msra.mxu0 0.0
    %76 = vmatprep.subr.mxu0 0.0
    %77 = vmatpush1.msra.mxu0 0.0
    %78 = vmatprep.subr.mxu0 0.0
    %79 = vmatpush1.msra.mxu0 0.0
    %80 = vmatprep.subr.mxu0 0.0
    %81 = vmatpush1.msra.mxu0 0.0
    %82 = vmatprep.subr.mxu0 0.0
    %83 = vmatpush1.msra.mxu0 0.0
    %84 = vmatprep.subr.mxu0 0.0
    %85 = vmatpush1.msra.mxu0 0.0
    %86 = vmatprep.subr.mxu0 0.0
    %87 = vmatpush1.msra.mxu0 0.0
    %88 = vmatprep.subr.mxu0 0.0
    %89 = vmatpush1.msra.mxu0 0.0
    %90 = vmatprep.subr.mxu0 0.0
    %91 = vmatpush1.msra.mxu0 0.0
    %92 = vmatprep.subr.mxu0 0.0
    %93 = vmatpush1.msra.mxu0 0.0
    %94 = vmatprep.subr.mxu0 0.0
    %95 = vmatpush1.msra.mxu0 0.0
    %96 = vmatprep.subr.mxu0 0.0
    %97 = vmatpush1.msra.mxu0 0.0
    %98 = vmatprep.subr.mxu0 0.0
    %99 = vmatpush1.msra.mxu0 0.0
    %100 = vmatprep.subr.mxu0 0.0
    %101 = vmatpush1.msra.mxu0 0.0
    %102 = vmatprep.subr.mxu0 0.0
    %103 = vmatpush1.msra.mxu0 0.0
    %104 = vmatprep.subr.mxu0 0.0
    %105 = vmatpush1.msra.mxu0 0.0
    %106 = vmatprep.subr.mxu0 0.0
    %107 = vmatpush1.msra.mxu0 0.0
    %108 = vmatprep.subr.mxu0 0.0
    %109 = vmatpush1.msra.mxu0 0.0
    %110 = vmatprep.subr.mxu0 0.0
    %111 = vmatpush1.msra.mxu0 0.0
    %112 = vmatprep.mubr.f32.mxu0 0.0
    %113 = vmatmul.mubr.f32.gmra.mrb[0].mxu0 %v46
    %v114 = vpop.f32.mrb[0].mxu0
    %v115 = vadd.f32 %v42, %v114
    %v116 = vpop.f32.mrb[0].mxu0
    %117 = vdwg.mxu0
    %vm118 = vcmask 261120
    %119 = vst.msk [vmem:[#allocation2] sm:$0xff] %vm118, %v115
    %v120 = vld [vmem:[%s2] sm:$0xff]
    %v121 = vld [vmem:[%s2 + $0x8] sm:$0xff]
    %v122 = vld [vmem:[%s2 + $0x10] sm:$0xff]
    %v123 = vld [vmem:[%s2 + $0x18] sm:$0xff]
    %v124 = vld [vmem:[#allocation2] sm:$0x1]
    %v126 = vsel %vm118, 0.0, 0
    %128 = vmatprep.subr.mxu0 0.0
    %129 = vmatpush1.msra.mxu0 %v120
    %130 = vmatprep.subr.mxu0 0.0
    %131 = vmatpush1.msra.mxu0 %v121
    %132 = vmatprep.subr.mxu0 0.0
    %133 = vmatpush1.msra.mxu0 %v122
    %134 = vmatprep.subr.mxu0 0.0
    %135 = vmatpush1.msra.mxu0 %v123
    %136 = vmatprep.subr.mxu0 0.0
    %137 = vmatpush1.msra.mxu0 0.0
    %138 = vmatprep.subr.mxu0 0.0
    %139 = vmatpush1.msra.mxu0 0.0
    %140 = vmatprep.subr.mxu0 0.0
    %141 = vmatpush1.msra.mxu0 0.0
    %142 = vmatprep.subr.mxu0 0.0
    %143 = vmatpush1.msra.mxu0 0.0
    %144 = vmatprep.subr.mxu0 0.0
    %145 = vmatpush1.msra.mxu0 0.0
    %146 = vmatprep.subr.mxu0 0.0
    %147 = vmatpush1.msra.mxu0 0.0
    %148 = vmatprep.subr.mxu0 0.0
    %149 = vmatpush1.msra.mxu0 0.0
    %150 = vmatprep.subr.mxu0 0.0
    %151 = vmatpush1.msra.mxu0 0.0
    %152 = vmatprep.subr.mxu0 0.0
    %153 = vmatpush1.msra.mxu0 0.0
    %154 = vmatprep.subr.mxu0 0.0
    %155 = vmatpush1.msra.mxu0 0.0
    %156 = vmatprep.subr.mxu0 0.0
    %157 = vmatpush1.msra.mxu0 0.0
    %158 = vmatprep.subr.mxu0 0.0
    %159 = vmatpush1.msra.mxu0 0.0
    %160 = vmatprep.subr.mxu0 0.0
    %161 = vmatpush1.msra.mxu0 0.0
    %162 = vmatprep.subr.mxu0 0.0
    %163 = vmatpush1.msra.mxu0 0.0
    %164 = vmatprep.subr.mxu0 0.0
    %165 = vmatpush1.msra.mxu0 0.0
    %166 = vmatprep.subr.mxu0 0.0
    %167 = vmatpush1.msra.mxu0 0.0
    %168 = vmatprep.subr.mxu0 0.0
    %169 = vmatpush1.msra.mxu0 0.0
    %170 = vmatprep.subr.mxu0 0.0
    %171 = vmatpush1.msra.mxu0 0.0
    %172 = vmatprep.subr.mxu0 0.0
    %173 = vmatpush1.msra.mxu0 0.0
    %174 = vmatprep.subr.mxu0 0.0
    %175 = vmatpush1.msra.mxu0 0.0
    %176 = vmatprep.subr.mxu0 0.0
    %177 = vmatpush1.msra.mxu0 0.0
    %178 = vmatprep.subr.mxu0 0.0
    %179 = vmatpush1.msra.mxu0 0.0
    %180 = vmatprep.subr.mxu0 0.0
    %181 = vmatpush1.msra.mxu0 0.0
    %182 = vmatprep.subr.mxu0 0.0
    %183 = vmatpush1.msra.mxu0 0.0
    %184 = vmatprep.subr.mxu0 0.0
    %185 = vmatpush1.msra.mxu0 0.0
    %186 = vmatprep.subr.mxu0 0.0
    %187 = vmatpush1.msra.mxu0 0.0
    %188 = vmatprep.subr.mxu0 0.0
    %189 = vmatpush1.msra.mxu0 0.0
    %190 = vmatprep.subr.mxu0 0.0
    %191 = vmatpush1.msra.mxu0 0.0
    %192 = vmatprep.mubr.f32.mxu0 0.0
    %193 = vmatmul.mubr.f32.gmra.mrb[0].mxu0 %v126
    %v194 = vpop.f32.mrb[0].mxu0
    %v195 = vadd.f32 0.0, %v194
    %v196 = vpop.f32.mrb[0].mxu0
    %197 = vdwg.mxu0
    %v198 = vadd.f32 %v124, %v195
    %v199 = vtanh.pop %v198
    %vm200 = vcmask 253952
    %201 = vst.msk [vmem:[#allocation2] sm:$0x1] %vm200, %v199
    %v202 = vld [vmem:[#allocation2 + $0x1] sm:$0x1]
    %v204 = vsel %vm118, %v199, 0
    %206 = vmatprep.subr.mxu0 0.0
    %207 = vmatpush1.msra.mxu0 %v120
    %208 = vmatprep.subr.mxu0 0.0
    %209 = vmatpush1.msra.mxu0 %v121
    %210 = vmatprep.subr.mxu0 0.0
    %211 = vmatpush1.msra.mxu0 %v122
    %212 = vmatprep.subr.mxu0 0.0
    %213 = vmatpush1.msra.mxu0 %v123
    %214 = vmatprep.subr.mxu0 0.0
    %215 = vmatpush1.msra.mxu0 0.0
    %216 = vmatprep.subr.mxu0 0.0
    %217 = vmatpush1.msra.mxu0 0.0
    %218 = vmatprep.subr.mxu0 0.0
    %219 = vmatpush1.msra.mxu0 0.0
    %220 = vmatprep.subr.mxu0 0.0
    %221 = vmatpush1.msra.mxu0 0.0
    %222 = vmatprep.subr.mxu0 0.0
    %223 = vmatpush1.msra.mxu0 0.0
    %224 = vmatprep.subr.mxu0 0.0
    %225 = vmatpush1.msra.mxu0 0.0
    %226 = vmatprep.subr.mxu0 0.0
    %227 = vmatpush1.msra.mxu0 0.0
    %228 = vmatprep.subr.mxu0 0.0
    %229 = vmatpush1.msra.mxu0 0.0
    %230 = vmatprep.subr.mxu0 0.0
    %231 = vmatpush1.msra.mxu0 0.0
    %232 = vmatprep.subr.mxu0 0.0
    %233 = vmatpush1.msra.mxu0 0.0
    %234 = vmatprep.subr.mxu0 0.0
    %235 = vmatpush1.msra.mxu0 0.0
    %236 = vmatprep.subr.mxu0 0.0
    %237 = vmatpush1.msra.mxu0 0.0
    %238 = vmatprep.subr.mxu0 0.0
    %239 = vmatpush1.msra.mxu0 0.0
    %240 = vmatprep.subr.mxu0 0.0
    %241 = vmatpush1.msra.mxu0 0.0
    %242 = vmatprep.subr.mxu0 0.0
    %243 = vmatpush1.msra.mxu0 0.0
    %244 = vmatprep.subr.mxu0 0.0
    %245 = vmatpush1.msra.mxu0 0.0
    %246 = vmatprep.subr.mxu0 0.0
    %247 = vmatpush1.msra.mxu0 0.0
    %248 = vmatprep.subr.mxu0 0.0
    %249 = vmatpush1.msra.mxu0 0.0
    %250 = vmatprep.subr.mxu0 0.0
    %251 = vmatpush1.msra.mxu0 0.0
    %252 = vmatprep.subr.mxu0 0.0
    %253 = vmatpush1.msra.mxu0 0.0
    %254 = vmatprep.subr.mxu0 0.0
    %255 = vmatpush1.msra.mxu0 0.0
    %256 = vmatprep.subr.mxu0 0.0
    %257 = vmatpush1.msra.mxu0 0.0
    %258 = vmatprep.subr.mxu0 0.0
    %259 = vmatpush1.msra.mxu0 0.0
    %260 = vmatprep.subr.mxu0 0.0
    %261 = vmatpush1.msra.mxu0 0.0
    %262 = vmatprep.subr.mxu0 0.0
    %263 = vmatpush1.msra.mxu0 0.0
    %264 = vmatprep.subr.mxu0 0.0
    %265 = vmatpush1.msra.mxu0 0.0
    %266 = vmatprep.subr.mxu0 0.0
    %267 = vmatpush1.msra.mxu0 0.0
    %268 = vmatprep.subr.mxu0 0.0
    %269 = vmatpush1.msra.mxu0 0.0
    %270 = vmatprep.mubr.f32.mxu0 0.0
    %271 = vmatmul.mubr.f32.gmra.mrb[0].mxu0 %v204
    %v272 = vpop.f32.mrb[0].mxu0
    %v273 = vadd.f32 0.0, %v272
    %v274 = vpop.f32.mrb[0].mxu0
    %275 = vdwg.mxu0
    %v276 = vadd.f32 %v202, %v273
    %v277 = vtanh.pop %v276
    %278 = vst.msk [vmem:[#allocation2 + $0x1] sm:$0x1] %vm200, %v277
    %v279 = vld [vmem:[#allocation2 + $0x2] sm:$0x1]
    %v281 = vsel %vm118, %v277, 0
    %283 = vmatprep.subr.mxu0 0.0
    %284 = vmatpush1.msra.mxu0 %v120
    %285 = vmatprep.subr.mxu0 0.0
    %286 = vmatpush1.msra.mxu0 %v121
    %287 = vmatprep.subr.mxu0 0.0
    %288 = vmatpush1.msra.mxu0 %v122
    %289 = vmatprep.subr.mxu0 0.0
    %290 = vmatpush1.msra.mxu0 %v123
    %291 = vmatprep.subr.mxu0 0.0
    %292 = vmatpush1.msra.mxu0 0.0
    %293 = vmatprep.subr.mxu0 0.0
    %294 = vmatpush1.msra.mxu0 0.0
    %295 = vmatprep.subr.mxu0 0.0
    %296 = vmatpush1.msra.mxu0 0.0
    %297 = vmatprep.subr.mxu0 0.0
    %298 = vmatpush1.msra.mxu0 0.0
    %299 = vmatprep.subr.mxu0 0.0
    %300 = vmatpush1.msra.mxu0 0.0
    %301 = vmatprep.subr.mxu0 0.0
    %302 = vmatpush1.msra.mxu0 0.0
    %303 = vmatprep.subr.mxu0 0.0
    %304 = vmatpush1.msra.mxu0 0.0
    %305 = vmatprep.subr.mxu0 0.0
    %306 = vmatpush1.msra.mxu0 0.0
    %307 = vmatprep.subr.mxu0 0.0
    %308 = vmatpush1.msra.mxu0 0.0
    %309 = vmatprep.subr.mxu0 0.0
    %310 = vmatpush1.msra.mxu0 0.0
    %311 = vmatprep.subr.mxu0 0.0
    %312 = vmatpush1.msra.mxu0 0.0
    %313 = vmatprep.subr.mxu0 0.0
    %314 = vmatpush1.msra.mxu0 0.0
    %315 = vmatprep.subr.mxu0 0.0
    %316 = vmatpush1.msra.mxu0 0.0
    %317 = vmatprep.subr.mxu0 0.0
    %318 = vmatpush1.msra.mxu0 0.0
    %319 = vmatprep.subr.mxu0 0.0
    %320 = vmatpush1.msra.mxu0 0.0
    %321 = vmatprep.subr.mxu0 0.0
    %322 = vmatpush1.msra.mxu0 0.0
    %323 = vmatprep.subr.mxu0 0.0
    %324 = vmatpush1.msra.mxu0 0.0
    %325 = vmatprep.subr.mxu0 0.0
    %326 = vmatpush1.msra.mxu0 0.0
    %327 = vmatprep.subr.mxu0 0.0
    %328 = vmatpush1.msra.mxu0 0.0
    %329 = vmatprep.subr.mxu0 0.0
    %330 = vmatpush1.msra.mxu0 0.0
    %331 = vmatprep.subr.mxu0 0.0
    %332 = vmatpush1.msra.mxu0 0.0
    %333 = vmatprep.subr.mxu0 0.0
    %334 = vmatpush1.msra.mxu0 0.0
    %335 = vmatprep.subr.mxu0 0.0
    %336 = vmatpush1.msra.mxu0 0.0
    %337 = vmatprep.subr.mxu0 0.0
    %338 = vmatpush1.msra.mxu0 0.0
    %339 = vmatprep.subr.mxu0 0.0
    %340 = vmatpush1.msra.mxu0 0.0
    %341 = vmatprep.subr.mxu0 0.0
    %342 = vmatpush1.msra.mxu0 0.0
    %343 = vmatprep.subr.mxu0 0.0
    %344 = vmatpush1.msra.mxu0 0.0
    %345 = vmatprep.subr.mxu0 0.0
    %346 = vmatpush1.msra.mxu0 0.0
    %347 = vmatprep.mubr.f32.mxu0 0.0
    %348 = vmatmul.mubr.f32.gmra.mrb[0].mxu0 %v281
    %v349 = vpop.f32.mrb[0].mxu0
    %v350 = vadd.f32 0.0, %v349
    %v351 = vpop.f32.mrb[0].mxu0
    %352 = vdwg.mxu0
    %v353 = vadd.f32 %v279, %v350
    %v354 = vtanh.pop %v353
    %355 = vst.msk [vmem:[#allocation2 + $0x2] sm:$0x1] %vm200, %v354
    %v356 = vld [vmem:[#allocation2 + $0x3] sm:$0x1]
    %v358 = vsel %vm118, %v354, 0
    %360 = vmatprep.subr.mxu0 0.0
    %361 = vmatpush1.msra.mxu0 %v120
    %362 = vmatprep.subr.mxu0 0.0
    %363 = vmatpush1.msra.mxu0 %v121
    %364 = vmatprep.subr.mxu0 0.0
    %365 = vmatpush1.msra.mxu0 %v122
    %366 = vmatprep.subr.mxu0 0.0
    %367 = vmatpush1.msra.mxu0 %v123
    %368 = vmatprep.subr.mxu0 0.0
    %369 = vmatpush1.msra.mxu0 0.0
    %370 = vmatprep.subr.mxu0 0.0
    %371 = vmatpush1.msra.mxu0 0.0
    %372 = vmatprep.subr.mxu0 0.0
    %373 = vmatpush1.msra.mxu0 0.0
    %374 = vmatprep.subr.mxu0 0.0
    %375 = vmatpush1.msra.mxu0 0.0
    %376 = vmatprep.subr.mxu0 0.0
    %377 = vmatpush1.msra.mxu0 0.0
    %378 = vmatprep.subr.mxu0 0.0
    %379 = vmatpush1.msra.mxu0 0.0
    %380 = vmatprep.subr.mxu0 0.0
    %381 = vmatpush1.msra.mxu0 0.0
    %382 = vmatprep.subr.mxu0 0.0
    %383 = vmatpush1.msra.mxu0 0.0
    %384 = vmatprep.subr.mxu0 0.0
    %385 = vmatpush1.msra.mxu0 0.0
    %386 = vmatprep.subr.mxu0 0.0
    %387 = vmatpush1.msra.mxu0 0.0
    %388 = vmatprep.subr.mxu0 0.0
    %389 = vmatpush1.msra.mxu0 0.0
    %390 = vmatprep.subr.mxu0 0.0
    %391 = vmatpush1.msra.mxu0 0.0
    %392 = vmatprep.subr.mxu0 0.0
    %393 = vmatpush1.msra.mxu0 0.0
    %394 = vmatprep.subr.mxu0 0.0
    %395 = vmatpush1.msra.mxu0 0.0
    %396 = vmatprep.subr.mxu0 0.0
    %397 = vmatpush1.msra.mxu0 0.0
    %398 = vmatprep.subr.mxu0 0.0
    %399 = vmatpush1.msra.mxu0 0.0
    %400 = vmatprep.subr.mxu0 0.0
    %401 = vmatpush1.msra.mxu0 0.0
    %402 = vmatprep.subr.mxu0 0.0
    %403 = vmatpush1.msra.mxu0 0.0
    %404 = vmatprep.subr.mxu0 0.0
    %405 = vmatpush1.msra.mxu0 0.0
    %406 = vmatprep.subr.mxu0 0.0
    %407 = vmatpush1.msra.mxu0 0.0
    %408 = vmatprep.subr.mxu0 0.0
    %409 = vmatpush1.msra.mxu0 0.0
    %410 = vmatprep.subr.mxu0 0.0
    %411 = vmatpush1.msra.mxu0 0.0
    %412 = vmatprep.subr.mxu0 0.0
    %413 = vmatpush1.msra.mxu0 0.0
    %414 = vmatprep.subr.mxu0 0.0
    %415 = vmatpush1.msra.mxu0 0.0
    %416 = vmatprep.subr.mxu0 0.0
    %417 = vmatpush1.msra.mxu0 0.0
    %418 = vmatprep.subr.mxu0 0.0
    %419 = vmatpush1.msra.mxu0 0.0
    %420 = vmatprep.subr.mxu0 0.0
    %421 = vmatpush1.msra.mxu0 0.0
    %422 = vmatprep.subr.mxu0 0.0
    %423 = vmatpush1.msra.mxu0 0.0
    %424 = vmatprep.mubr.f32.mxu0 0.0
    %425 = vmatmul.mubr.f32.gmra.mrb[0].mxu0 %v358
    %v426 = vpop.f32.mrb[0].mxu0
    %v427 = vadd.f32 0.0, %v426
    %v428 = vpop.f32.mrb[0].mxu0
    %429 = vdwg.mxu0
    %v430 = vadd.f32 %v356, %v427
    %v431 = vtanh.pop %v430
    %432 = vst.msk [vmem:[#allocation2 + $0x3] sm:$0x1] %vm200, %v431
    %v433 = vld [vmem:[#allocation2 + $0x4] sm:$0x1]
    %v435 = vsel %vm118, %v431, 0
    %437 = vmatprep.subr.mxu0 0.0
    %438 = vmatpush1.msra.mxu0 %v120
    %439 = vmatprep.subr.mxu0 0.0
    %440 = vmatpush1.msra.mxu0 %v121
    %441 = vmatprep.subr.mxu0 0.0
    %442 = vmatpush1.msra.mxu0 %v122
    %443 = vmatprep.subr.mxu0 0.0
    %444 = vmatpush1.msra.mxu0 %v123
    %445 = vmatprep.subr.mxu0 0.0
    %446 = vmatpush1.msra.mxu0 0.0
    %447 = vmatprep.subr.mxu0 0.0
    %448 = vmatpush1.msra.mxu0 0.0
    %449 = vmatprep.subr.mxu0 0.0
    %450 = vmatpush1.msra.mxu0 0.0
    %451 = vmatprep.subr.mxu0 0.0
    %452 = vmatpush1.msra.mxu0 0.0
    %453 = vmatprep.subr.mxu0 0.0
    %454 = vmatpush1.msra.mxu0 0.0
    %455 = vmatprep.subr.mxu0 0.0
    %456 = vmatpush1.msra.mxu0 0.0
    %457 = vmatprep.subr.mxu0 0.0
    %458 = vmatpush1.msra.mxu0 0.0
    %459 = vmatprep.subr.mxu0 0.0
    %460 = vmatpush1.msra.mxu0 0.0
    %461 = vmatprep.subr.mxu0 0.0
    %462 = vmatpush1.msra.mxu0 0.0
    %463 = vmatprep.subr.mxu0 0.0
    %464 = vmatpush1.msra.mxu0 0.0
    %465 = vmatprep.subr.mxu0 0.0
    %466 = vmatpush1.msra.mxu0 0.0
    %467 = vmatprep.subr.mxu0 0.0
    %468 = vmatpush1.msra.mxu0 0.0
    %469 = vmatprep.subr.mxu0 0.0
    %470 = vmatpush1.msra.mxu0 0.0
    %471 = vmatprep.subr.mxu0 0.0
    %472 = vmatpush1.msra.mxu0 0.0
    %473 = vmatprep.subr.mxu0 0.0
    %474 = vmatpush1.msra.mxu0 0.0
    %475 = vmatprep.subr.mxu0 0.0
    %476 = vmatpush1.msra.mxu0 0.0
    %477 = vmatprep.subr.mxu0 0.0
    %478 = vmatpush1.msra.mxu0 0.0
    %479 = vmatprep.subr.mxu0 0.0
    %480 = vmatpush1.msra.mxu0 0.0
    %481 = vmatprep.subr.mxu0 0.0
    %482 = vmatpush1.msra.mxu0 0.0
    %483 = vmatprep.subr.mxu0 0.0
    %484 = vmatpush1.msra.mxu0 0.0
    %485 = vmatprep.subr.mxu0 0.0
    %486 = vmatpush1.msra.mxu0 0.0
    %487 = vmatprep.subr.mxu0 0.0
    %488 = vmatpush1.msra.mxu0 0.0
    %489 = vmatprep.subr.mxu0 0.0
    %490 = vmatpush1.msra.mxu0 0.0
    %491 = vmatprep.subr.mxu0 0.0
    %492 = vmatpush1.msra.mxu0 0.0
    %493 = vmatprep.subr.mxu0 0.0
    %494 = vmatpush1.msra.mxu0 0.0
    %495 = vmatprep.subr.mxu0 0.0
    %496 = vmatpush1.msra.mxu0 0.0
    %497 = vmatprep.subr.mxu0 0.0
    %498 = vmatpush1.msra.mxu0 0.0
    %499 = vmatprep.subr.mxu0 0.0
    %500 = vmatpush1.msra.mxu0 0.0
    %501 = vmatprep.mubr.f32.mxu0 0.0
    %502 = vmatmul.mubr.f32.gmra.mrb[0].mxu0 %v435
    %v503 = vpop.f32.mrb[0].mxu0
    %v504 = vadd.f32 0.0, %v503
    %v505 = vpop.f32.mrb[0].mxu0
    %506 = vdwg.mxu0
    %v507 = vadd.f32 %v433, %v504
    %v508 = vtanh.pop %v507
    %509 = vst.msk [vmem:[#allocation2 + $0x4] sm:$0x1] %vm200, %v508
    %v510 = vld [vmem:[#allocation2 + $0x5] sm:$0x1]
    %v512 = vsel %vm118, %v508, 0
    %514 = vmatprep.subr.mxu0 0.0
    %515 = vmatpush1.msra.mxu0 %v120
    %516 = vmatprep.subr.mxu0 0.0
    %517 = vmatpush1.msra.mxu0 %v121
    %518 = vmatprep.subr.mxu0 0.0
    %519 = vmatpush1.msra.mxu0 %v122
    %520 = vmatprep.subr.mxu0 0.0
    %521 = vmatpush1.msra.mxu0 %v123
    %522 = vmatprep.subr.mxu0 0.0
    %523 = vmatpush1.msra.mxu0 0.0
    %524 = vmatprep.subr.mxu0 0.0
    %525 = vmatpush1.msra.mxu0 0.0
    %526 = vmatprep.subr.mxu0 0.0
    %527 = vmatpush1.msra.mxu0 0.0
    %528 = vmatprep.subr.mxu0 0.0
    %529 = vmatpush1.msra.mxu0 0.0
    %530 = vmatprep.subr.mxu0 0.0
    %531 = vmatpush1.msra.mxu0 0.0
    %532 = vmatprep.subr.mxu0 0.0
    %533 = vmatpush1.msra.mxu0 0.0
    %534 = vmatprep.subr.mxu0 0.0
    %535 = vmatpush1.msra.mxu0 0.0
    %536 = vmatprep.subr.mxu0 0.0
    %537 = vmatpush1.msra.mxu0 0.0
    %538 = vmatprep.subr.mxu0 0.0
    %539 = vmatpush1.msra.mxu0 0.0
    %540 = vmatprep.subr.mxu0 0.0
    %541 = vmatpush1.msra.mxu0 0.0
    %542 = vmatprep.subr.mxu0 0.0
    %543 = vmatpush1.msra.mxu0 0.0
    %544 = vmatprep.subr.mxu0 0.0
    %545 = vmatpush1.msra.mxu0 0.0
    %546 = vmatprep.subr.mxu0 0.0
    %547 = vmatpush1.msra.mxu0 0.0
    %548 = vmatprep.subr.mxu0 0.0
    %549 = vmatpush1.msra.mxu0 0.0
    %550 = vmatprep.subr.mxu0 0.0
    %551 = vmatpush1.msra.mxu0 0.0
    %552 = vmatprep.subr.mxu0 0.0
    %553 = vmatpush1.msra.mxu0 0.0
    %554 = vmatprep.subr.mxu0 0.0
    %555 = vmatpush1.msra.mxu0 0.0
    %556 = vmatprep.subr.mxu0 0.0
    %557 = vmatpush1.msra.mxu0 0.0
    %558 = vmatprep.subr.mxu0 0.0
    %559 = vmatpush1.msra.mxu0 0.0
    %560 = vmatprep.subr.mxu0 0.0
    %561 = vmatpush1.msra.mxu0 0.0
    %562 = vmatprep.subr.mxu0 0.0
    %563 = vmatpush1.msra.mxu0 0.0
    %564 = vmatprep.subr.mxu0 0.0
    %565 = vmatpush1.msra.mxu0 0.0
    %566 = vmatprep.subr.mxu0 0.0
    %567 = vmatpush1.msra.mxu0 0.0
    %568 = vmatprep.subr.mxu0 0.0
    %569 = vmatpush1.msra.mxu0 0.0
    %570 = vmatprep.subr.mxu0 0.0
    %571 = vmatpush1.msra.mxu0 0.0
    %572 = vmatprep.subr.mxu0 0.0
    %573 = vmatpush1.msra.mxu0 0.0
    %574 = vmatprep.subr.mxu0 0.0
    %575 = vmatpush1.msra.mxu0 0.0
    %576 = vmatprep.subr.mxu0 0.0
    %577 = vmatpush1.msra.mxu0 0.0
    %578 = vmatprep.mubr.f32.mxu0 0.0
    %579 = vmatmul.mubr.f32.gmra.mrb[0].mxu0 %v512
    %v580 = vpop.f32.mrb[0].mxu0
    %v581 = vadd.f32 0.0, %v580
    %v582 = vpop.f32.mrb[0].mxu0
    %583 = vdwg.mxu0
    %v584 = vadd.f32 %v510, %v581
    %v585 = vtanh.pop %v584
    %586 = vst.msk [vmem:[#allocation2 + $0x5] sm:$0x1] %vm200, %v585
    %v587 = vld [vmem:[#allocation2 + $0x6] sm:$0x1]
    %v589 = vsel %vm118, %v585, 0
    %591 = vmatprep.subr.mxu0 0.0
    %592 = vmatpush1.msra.mxu0 %v120
    %593 = vmatprep.subr.mxu0 0.0
    %594 = vmatpush1.msra.mxu0 %v121
    %595 = vmatprep.subr.mxu0 0.0
    %596 = vmatpush1.msra.mxu0 %v122
    %597 = vmatprep.subr.mxu0 0.0
    %598 = vmatpush1.msra.mxu0 %v123
    %599 = vmatprep.subr.mxu0 0.0
    %600 = vmatpush1.msra.mxu0 0.0
    %601 = vmatprep.subr.mxu0 0.0
    %602 = vmatpush1.msra.mxu0 0.0
    %603 = vmatprep.subr.mxu0 0.0
    %604 = vmatpush1.msra.mxu0 0.0
    %605 = vmatprep.subr.mxu0 0.0
    %606 = vmatpush1.msra.mxu0 0.0
    %607 = vmatprep.subr.mxu0 0.0
    %608 = vmatpush1.msra.mxu0 0.0
    %609 = vmatprep.subr.mxu0 0.0
    %610 = vmatpush1.msra.mxu0 0.0
    %611 = vmatprep.subr.mxu0 0.0
    %612 = vmatpush1.msra.mxu0 0.0
    %613 = vmatprep.subr.mxu0 0.0
    %614 = vmatpush1.msra.mxu0 0.0
    %615 = vmatprep.subr.mxu0 0.0
    %616 = vmatpush1.msra.mxu0 0.0
    %617 = vmatprep.subr.mxu0 0.0
    %618 = vmatpush1.msra.mxu0 0.0
    %619 = vmatprep.subr.mxu0 0.0
    %620 = vmatpush1.msra.mxu0 0.0
    %621 = vmatprep.subr.mxu0 0.0
    %622 = vmatpush1.msra.mxu0 0.0
    %623 = vmatprep.subr.mxu0 0.0
    %624 = vmatpush1.msra.mxu0 0.0
    %625 = vmatprep.subr.mxu0 0.0
    %626 = vmatpush1.msra.mxu0 0.0
    %627 = vmatprep.subr.mxu0 0.0
    %628 = vmatpush1.msra.mxu0 0.0
    %629 = vmatprep.subr.mxu0 0.0
    %630 = vmatpush1.msra.mxu0 0.0
    %631 = vmatprep.subr.mxu0 0.0
    %632 = vmatpush1.msra.mxu0 0.0
    %633 = vmatprep.subr.mxu0 0.0
    %634 = vmatpush1.msra.mxu0 0.0
    %635 = vmatprep.subr.mxu0 0.0
    %636 = vmatpush1.msra.mxu0 0.0
    %637 = vmatprep.subr.mxu0 0.0
    %638 = vmatpush1.msra.mxu0 0.0
    %639 = vmatprep.subr.mxu0 0.0
    %640 = vmatpush1.msra.mxu0 0.0
    %641 = vmatprep.subr.mxu0 0.0
    %642 = vmatpush1.msra.mxu0 0.0
    %643 = vmatprep.subr.mxu0 0.0
    %644 = vmatpush1.msra.mxu0 0.0
    %645 = vmatprep.subr.mxu0 0.0
    %646 = vmatpush1.msra.mxu0 0.0
    %647 = vmatprep.subr.mxu0 0.0
    %648 = vmatpush1.msra.mxu0 0.0
    %649 = vmatprep.subr.mxu0 0.0
    %650 = vmatpush1.msra.mxu0 0.0
    %651 = vmatprep.subr.mxu0 0.0
    %652 = vmatpush1.msra.mxu0 0.0
    %653 = vmatprep.subr.mxu0 0.0
    %654 = vmatpush1.msra.mxu0 0.0
    %655 = vmatprep.mubr.f32.mxu0 0.0
    %656 = vmatmul.mubr.f32.gmra.mrb[0].mxu0 %v589
    %v657 = vpop.f32.mrb[0].mxu0
    %v658 = vadd.f32 0.0, %v657
    %v659 = vpop.f32.mrb[0].mxu0
    %660 = vdwg.mxu0
    %v661 = vadd.f32 %v587, %v658
    %v662 = vtanh.pop %v661
    %663 = vst.msk [vmem:[#allocation2 + $0x6] sm:$0x1] %vm200, %v662
    %v664 = vld [vmem:[#allocation2 + $0x7] sm:$0x1]
    %v666 = vsel %vm118, %v662, 0
    %668 = vmatprep.subr.mxu0 0.0
    %669 = vmatpush1.msra.mxu0 %v120
    %670 = vmatprep.subr.mxu0 0.0
    %671 = vmatpush1.msra.mxu0 %v121
    %672 = vmatprep.subr.mxu0 0.0
    %673 = vmatpush1.msra.mxu0 %v122
    %674 = vmatprep.subr.mxu0 0.0
    %675 = vmatpush1.msra.mxu0 %v123
    %676 = vmatprep.subr.mxu0 0.0
    %677 = vmatpush1.msra.mxu0 0.0
    %678 = vmatprep.subr.mxu0 0.0
    %679 = vmatpush1.msra.mxu0 0.0
    %680 = vmatprep.subr.mxu0 0.0
    %681 = vmatpush1.msra.mxu0 0.0
    %682 = vmatprep.subr.mxu0 0.0
    %683 = vmatpush1.msra.mxu0 0.0
    %684 = vmatprep.subr.mxu0 0.0
    %685 = vmatpush1.msra.mxu0 0.0
    %686 = vmatprep.subr.mxu0 0.0
    %687 = vmatpush1.msra.mxu0 0.0
    %688 = vmatprep.subr.mxu0 0.0
    %689 = vmatpush1.msra.mxu0 0.0
    %690 = vmatprep.subr.mxu0 0.0
    %691 = vmatpush1.msra.mxu0 0.0
    %692 = vmatprep.subr.mxu0 0.0
    %693 = vmatpush1.msra.mxu0 0.0
    %694 = vmatprep.subr.mxu0 0.0
    %695 = vmatpush1.msra.mxu0 0.0
    %696 = vmatprep.subr.mxu0 0.0
    %697 = vmatpush1.msra.mxu0 0.0
    %698 = vmatprep.subr.mxu0 0.0
    %699 = vmatpush1.msra.mxu0 0.0
    %700 = vmatprep.subr.mxu0 0.0
    %701 = vmatpush1.msra.mxu0 0.0
    %702 = vmatprep.subr.mxu0 0.0
    %703 = vmatpush1.msra.mxu0 0.0
    %704 = vmatprep.subr.mxu0 0.0
    %705 = vmatpush1.msra.mxu0 0.0
    %706 = vmatprep.subr.mxu0 0.0
    %707 = vmatpush1.msra.mxu0 0.0
    %708 = vmatprep.subr.mxu0 0.0
    %709 = vmatpush1.msra.mxu0 0.0
    %710 = vmatprep.subr.mxu0 0.0
    %711 = vmatpush1.msra.mxu0 0.0
    %712 = vmatprep.subr.mxu0 0.0
    %713 = vmatpush1.msra.mxu0 0.0
    %714 = vmatprep.subr.mxu0 0.0
    %715 = vmatpush1.msra.mxu0 0.0
    %716 = vmatprep.subr.mxu0 0.0
    %717 = vmatpush1.msra.mxu0 0.0
    %718 = vmatprep.subr.mxu0 0.0
    %719 = vmatpush1.msra.mxu0 0.0
    %720 = vmatprep.subr.mxu0 0.0
    %721 = vmatpush1.msra.mxu0 0.0
    %722 = vmatprep.subr.mxu0 0.0
    %723 = vmatpush1.msra.mxu0 0.0
    %724 = vmatprep.subr.mxu0 0.0
    %725 = vmatpush1.msra.mxu0 0.0
    %726 = vmatprep.subr.mxu0 0.0
    %727 = vmatpush1.msra.mxu0 0.0
    %728 = vmatprep.subr.mxu0 0.0
    %729 = vmatpush1.msra.mxu0 0.0
    %730 = vmatprep.subr.mxu0 0.0
    %731 = vmatpush1.msra.mxu0 0.0
    %732 = vmatprep.mubr.f32.mxu0 0.0
    %733 = vmatmul.mubr.f32.gmra.mrb[0].mxu0 %v666
    %v734 = vpop.f32.mrb[0].mxu0
    %v735 = vadd.f32 0.0, %v734
    %v736 = vpop.f32.mrb[0].mxu0
    %737 = vdwg.mxu0
    %v738 = vadd.f32 %v664, %v735
    %v739 = vtanh.pop %v738
    %740 = vst.msk [vmem:[#allocation2 + $0x7] sm:$0x1] %vm200, %v739
    %v741 = vld [vmem:[#allocation2] sm:$0xff]
    %v742 = vld [vmem:[%s4] sm:$0xff]
    %v743 = vld [vmem:[%s4 + $0x8] sm:$0xff]
    %v744 = vld [vmem:[%s4 + $0x10] sm:$0xff]
    %v745 = vld [vmem:[%s4 + $0x18] sm:$0xff]
    %v746 = vld [vmem:[%s5] sm:$0x1]
    %v748 = vlaneseq
    %v749 = vshrl.u32 %v748, 7
    %v750 = vsub.s32 0, %v749
    %v751 = vrot.slane %v746, %v750
    %v754 = vsel %vm118, %v741, 0
    %756 = vmatprep.subr.mxu0 0.0
    %757 = vmatpush1.msra.mxu0 %v742
    %758 = vmatprep.subr.mxu0 0.0
    %759 = vmatpush1.msra.mxu0 %v743
    %760 = vmatprep.subr.mxu0 0.0
    %761 = vmatpush1.msra.mxu0 %v744
    %762 = vmatprep.subr.mxu0 0.0
    %763 = vmatpush1.msra.mxu0 %v745
    %764 = vmatprep.subr.mxu0 0.0
    %765 = vmatpush1.msra.mxu0 0.0
    %766 = vmatprep.subr.mxu0 0.0
    %767 = vmatpush1.msra.mxu0 0.0
    %768 = vmatprep.subr.mxu0 0.0
    %769 = vmatpush1.msra.mxu0 0.0
    %770 = vmatprep.subr.mxu0 0.0
    %771 = vmatpush1.msra.mxu0 0.0
    %772 = vmatprep.subr.mxu0 0.0
    %773 = vmatpush1.msra.mxu0 0.0
    %774 = vmatprep.subr.mxu0 0.0
    %775 = vmatpush1.msra.mxu0 0.0
    %776 = vmatprep.subr.mxu0 0.0
    %777 = vmatpush1.msra.mxu0 0.0
    %778 = vmatprep.subr.mxu0 0.0
    %779 = vmatpush1.msra.mxu0 0.0
    %780 = vmatprep.subr.mxu0 0.0
    %781 = vmatpush1.msra.mxu0 0.0
    %782 = vmatprep.subr.mxu0 0.0
    %783 = vmatpush1.msra.mxu0 0.0
    %784 = vmatprep.subr.mxu0 0.0
    %785 = vmatpush1.msra.mxu0 0.0
    %786 = vmatprep.subr.mxu0 0.0
    %787 = vmatpush1.msra.mxu0 0.0
    %788 = vmatprep.subr.mxu0 0.0
    %789 = vmatpush1.msra.mxu0 0.0
    %790 = vmatprep.subr.mxu0 0.0
    %791 = vmatpush1.msra.mxu0 0.0
    %792 = vmatprep.subr.mxu0 0.0
    %793 = vmatpush1.msra.mxu0 0.0
    %794 = vmatprep.subr.mxu0 0.0
    %795 = vmatpush1.msra.mxu0 0.0
    %796 = vmatprep.subr.mxu0 0.0
    %797 = vmatpush1.msra.mxu0 0.0
    %798 = vmatprep.subr.mxu0 0.0
    %799 = vmatpush1.msra.mxu0 0.0
    %800 = vmatprep.subr.mxu0 0.0
    %801 = vmatpush1.msra.mxu0 0.0
    %802 = vmatprep.subr.mxu0 0.0
    %803 = vmatpush1.msra.mxu0 0.0
    %804 = vmatprep.subr.mxu0 0.0
    %805 = vmatpush1.msra.mxu0 0.0
    %806 = vmatprep.subr.mxu0 0.0
    %807 = vmatpush1.msra.mxu0 0.0
    %808 = vmatprep.subr.mxu0 0.0
    %809 = vmatpush1.msra.mxu0 0.0
    %810 = vmatprep.subr.mxu0 0.0
    %811 = vmatpush1.msra.mxu0 0.0
    %812 = vmatprep.subr.mxu0 0.0
    %813 = vmatpush1.msra.mxu0 0.0
    %814 = vmatprep.subr.mxu0 0.0
    %815 = vmatpush1.msra.mxu0 0.0
    %816 = vmatprep.subr.mxu0 0.0
    %817 = vmatpush1.msra.mxu0 0.0
    %818 = vmatprep.subr.mxu0 0.0
    %819 = vmatpush1.msra.mxu0 0.0
    %820 = vmatprep.mubr.f32.mxu0 0.0
    %821 = vmatmul.mubr.f32.gmra.mrb[0].mxu0 %v754
    %v822 = vpop.f32.mrb[0].mxu0
    %v823 = vadd.f32 %v751, %v822
    %v824 = vpop.f32.mrb[0].mxu0
    %825 = vdwg.mxu0
    %vm826 = vcmask 31744
    %827 = vst.msk [vmem:[%s6] sm:$0xff] %vm826, %v823
    // Predicated region
    $region30: #{rnn_forward_prepared.1} parent=1 // pred_check
      _
    $region31: #{rnn_forward_prepared.1} parent=1 // pred_check_branch
      %829 = sbr.rel (0) target = $region33
    $region32: #{rnn_forward_prepared.1} parent=1 // pred_region
      _
    $region33: #{rnn_forward_prepared.1} parent=1 // pred_fallthru
      _
    // Predicated region
    $region34: #{rnn_forward_prepared.1} parent=1 // pred_check
      _
    $region35: #{rnn_forward_prepared.1} parent=1 // pred_check_branch
      %831 = sbr.rel (0) target = $region37
    $region36: #{rnn_forward_prepared.1} parent=1 // pred_region
      _
    $region37: #{rnn_forward_prepared.1} parent=1 // pred_fallthru
      _
    %832 = vsyncpa [#allocation4], 1

</llo_original>
